<compile_context>
chip_gen: v7x
topology: tpu7x:2x2x1
jax: 0.10.0
libtpu: 0.0.40
codegen_flags: <defaults>
</compile_context>

<pallas_src>
import numpy as np
import jax
import jax.numpy as jnp
from jax.experimental import pallas as pl
from jax.experimental.pallas import tpu as pltpu

_LANE = 128           # TPU vreg lane width
_MAX_TILE_ROWS = 512  # rows per block (multiple of 8); keeps VMEM use ~8 MiB


def _copy_kernel(x_ref, o_ref):
    # Abstract base class defines no computation -> identity.
    o_ref[...] = x_ref[...]


def _pick_lane_dense_shape(n):
    """Largest lane-dense width (multiple of 128) that evenly divides n."""
    for w in (1024, 512, 256, 128):
        if n % w == 0:
            return n // w, w
    return None


def _tiled_identity_2d(x2d):
    rows, width = x2d.shape
    tile_w = width                                   # width is already <= 1024
    tile_r = rows if rows <= _MAX_TILE_ROWS else _MAX_TILE_ROWS
    grid = (pl.cdiv(rows, tile_r), pl.cdiv(width, tile_w))
    return pl.pallas_call(
        _copy_kernel,
        out_shape=jax.ShapeDtypeStruct((rows, width), x2d.dtype),
        grid=grid,
        in_specs=[pl.BlockSpec((tile_r, tile_w), lambda i, j: (i, j))],
        out_specs=pl.BlockSpec((tile_r, tile_w), lambda i, j: (i, j)),
        # Output aliases the input buffer: no extra HBM allocation, each tile
        # is copied in place (disjoint regions, safe under pipelining).
        input_output_aliases={0: 0},
        compiler_params=pltpu.CompilerParams(
            dimension_semantics=("parallel", "parallel")),
    )(x2d)


@jax.jit
def neural_network_forward(x: jax.Array) -> jax.Array:
    """Pallas equivalent of NeuralNetwork.forward (abstract -> identity)."""
    orig_shape = x.shape
    n = x.size
    flat = x.reshape(-1)

    shp = _pick_lane_dense_shape(n)
    if shp is None:
        # Fallback for sizes not divisible by 128: pad, copy, slice back.
        pad = (-n) % _LANE
        flat = jnp.pad(flat, (0, pad))
        shp = (flat.size // _LANE, _LANE)

    y2d = _tiled_identity_2d(flat.reshape(shp))
    return y2d.reshape(-1)[:n].reshape(orig_shape)


if __name__ == "__main__":
    key = jax.random.PRNGKey(0)
    # Small NCHW input consistent with a conv-net style module.
    x = jax.random.normal(key, (2, 4, 16, 16), dtype=jnp.float32)
    # Host copy for the reference check (internal buffers may be aliased).
    x_host = np.asarray(jax.device_get(x))

    y = neural_network_forward(x)
    jax.block_until_ready(y)

    assert y.shape == x_host.shape and y.dtype == jnp.float32
    assert np.allclose(np.asarray(jax.device_get(y)), x_host)

    print("KERNEL_OK")
</pallas_src>

<mosaic_0001>
module attributes {stable_mosaic.version = 11 : i64} {
  func.func @_copy_kernel(%arg0: i32, %arg1: i32, %arg2: memref<2x1024xf32, #tpu.memory_space<vmem>>, %arg3: memref<2x1024xf32, #tpu.memory_space<vmem>>) attributes {dimension_semantics = [#tpu.dimension_semantics<parallel>, #tpu.dimension_semantics<parallel>], iteration_bounds = array<i64: 1, 1>, scalar_prefetch = 0 : i64, scratch_operands = 0 : i64, tpu.core_type = #tpu.core_type<tc>, window_params = [{transform_indices = @transform_0, window_bounds = array<i64: 2, 1024>}, {transform_indices = @transform_1, window_bounds = array<i64: 2, 1024>}]} {
    %c0 = arith.constant 0 : index
    %c0_0 = arith.constant 0 : index
    %0 = vector.load %arg2[%c0, %c0_0] : memref<2x1024xf32, #tpu.memory_space<vmem>>, vector<2x1024xf32>
    %c0_1 = arith.constant 0 : index
    %c0_2 = arith.constant 0 : index
    %1 = vector.load %arg3[%c0_1, %c0_2] : memref<2x1024xf32, #tpu.memory_space<vmem>>, vector<2x1024xf32>
    tpu.vector_store %arg3[%c0_1, %c0_2], %0 {strides = array<i32>} : memref<2x1024xf32, #tpu.memory_space<vmem>>, vector<2x1024xf32>,
    return
  }
  func.func @transform_0(%arg0: i32, %arg1: i32) -> (i32, i32) {
    %c0_i32 = arith.constant 0 : i32
    return %arg0, %arg1 : i32, i32
  }
  func.func @transform_1(%arg0: i32, %arg1: i32) -> (i32, i32) {
    %c0_i32 = arith.constant 0 : i32
    return %arg0, %arg1 : i32, i32
  }
}

</mosaic_0001>

<llo_original>
// kernel: neural_network_forward.1
$region0: #{neural_network_forward.1}
  #allocation0 [shape = 'u32[]', space=smem, size = 0x4, offset = 0x4, fixed_abs, tag = 'smem constant byte address 0x4 - core index']
  #allocation1 [shape = 'u32[144,128]{1,0:T(1,128)}', space=vmem, size = 0x12000, scoped, tag = 'internal scratch']
  %s0 = inlined_call_operand.vmem [shape: f32[2,1024], index: 0, kind: input, shape index: {}, may-alias: {0,1}]
  %s1 = inlined_call_operand.vmem [shape: f32[2,1024], index: 1, kind: output, shape index: {}, may-alias: {0,1}]
  %s2 = sld [smem:[#allocation0]]
  $region14: #{neural_network_forward.1} parent=0
    _
  %s4 = ssub.s32 1, %s2
  %s5 = scalar_select 0, %s4, %s2
  // Predicated region
  $region2: #{neural_network_forward.1} parent=0 // pred_check
    _
  $region3: #{neural_network_forward.1} parent=0 // pred_check_branch
    %7 = sbr.rel (0) target = $region5
  $region4: #{neural_network_forward.1} parent=0 // pred_region
    _
  $region5: #{neural_network_forward.1} parent=0 // pred_fallthru
    _
  %v8 = vld [vmem:[%s0] sm:$0xff]
  %v9 = vld [vmem:[%s0 + $0x8] sm:$0xff]
  %10 = vst [vmem:[%s1] sm:$0xff] %v8
  %11 = vst [vmem:[%s1 + $0x8] sm:$0xff] %v9
  // Predicated region
  $region6: #{neural_network_forward.1} parent=0 // pred_check
    _
  $region7: #{neural_network_forward.1} parent=0 // pred_check_branch
    %13 = sbr.rel (0) target = $region9
  $region8: #{neural_network_forward.1} parent=0 // pred_region
    _
  $region9: #{neural_network_forward.1} parent=0 // pred_fallthru
    _
  // Predicated region
  $region10: #{neural_network_forward.1} parent=0 // pred_check
    _
  $region11: #{neural_network_forward.1} parent=0 // pred_check_branch
    %15 = sbr.rel (0) target = $region13
  $region12: #{neural_network_forward.1} parent=0 // pred_region
    _
  $region13: #{neural_network_forward.1} parent=0 // pred_fallthru
    _

</llo_original>
